<compile_context>
chip_gen: v6e
topology: v6e:2x2x1
jax: 0.10.0
libtpu: 0.0.40
codegen_flags: <defaults>
</compile_context>

<pallas_src>
import functools
import math

import jax
import jax.numpy as jnp
from jax.experimental import pallas as pl
from jax.experimental.pallas import tpu as pltpu


def _round_up(x: int, m: int) -> int:
    return ((x + m - 1) // m) * m


def _embed_gather_kernel(ids_ref, valid_ref, w_hbm, out_ref, gather_buf, sem, *,
                         tok_block: int):
    # ids_ref    : (T_pad,) int32 in SMEM (scalar prefetch) - clamped local ids
    # valid_ref  : (tok_block, 1) int32 VMEM block - 1 iff id in partition range
    # w_hbm      : (V, 1, D) embedding table, raw HBM ref (no auto-DMA)
    # out_ref    : (tok_block, D) output tile in VMEM
    # gather_buf : (tok_block, D) VMEM scratch the row-gather DMAs land in
    # sem        : single DMA semaphore shared by all row copies (same size ->
    #              waits are fungible)
    base = pl.program_id(0) * tok_block

    def row_copy(i, row):
        # Static destination sublane offset i; dynamic HBM source row.
        return pltpu.make_async_copy(
            w_hbm.at[row], gather_buf.at[pl.ds(i, 1), :], sem)

    # Issue every row-gather DMA before the first wait so tok_block copies are
    # in flight simultaneously (hides per-row HBM latency), then drain.
    for i in range(tok_block):
        row_copy(i, ids_ref[base + i]).start()
    for i in range(tok_block):
        row_copy(i, 0).wait()          # source index irrelevant for wait (size only)

    # Single whole-tile vector select replaces per-row control flow: zero the
    # rows whose global id fell outside [vocab_start_index, vocab_end_index).
    valid = valid_ref[...] != 0                                  # (tok_block, 1)
    out_ref[...] = jnp.where(valid, gather_buf[...], 0).astype(out_ref.dtype)


def vocab_parallel_embedding(ids, weight, *, vocab_start_index, vocab_end_index,
                             tok_block=256):
    """ids: (B, S) int; weight: (V_partition, D) -> (B, S, D) in weight dtype."""
    B, S = ids.shape
    V, D = weight.shape
    T = B * S

    ids_flat = ids.reshape(T).astype(jnp.int32)
    in_range = (ids_flat >= vocab_start_index) & (ids_flat < vocab_end_index)
    # Clamp BEFORE the kernel: gather DMA addressing must never go out of bounds.
    local_ids = jnp.where(in_range, ids_flat - vocab_start_index, 0).astype(jnp.int32)
    valid = in_range.astype(jnp.int32)

    # Token block: multiple of 16 (sublane-dense output stores for f32 and bf16).
    tok_block = max(16, min(int(tok_block), _round_up(T, 16)))
    tok_block = _round_up(tok_block, 16)
    T_pad = _round_up(T, tok_block)
    if T_pad != T:
        pad = T_pad - T
        local_ids = jnp.pad(local_ids, (0, pad))     # padded rows gather row 0 ...
        valid = jnp.pad(valid, (0, pad))             # ... and are zeroed by the mask

    valid2d = valid.reshape(T_pad, 1)
    w3 = weight.reshape(V, 1, D)                     # leading-dim DMA addressing

    itemsize = jnp.dtype(weight.dtype).itemsize
    # gather scratch (1x) + double-buffered output tiles (2x) + tiny valid
    # blocks + headroom; capped so it is safe on every generation (v7x: 64 MiB).
    vmem_limit = int(4 * tok_block * D * itemsize + (8 << 20))
    vmem_limit = min(vmem_limit, 64 << 20)

    grid = (T_pad // tok_block,)
    kernel = functools.partial(_embed_gather_kernel, tok_block=tok_block)

    out = pl.pallas_call(
        kernel,
        out_shape=jax.ShapeDtypeStruct((T_pad, D), weight.dtype),
        grid_spec=pltpu.PrefetchScalarGridSpec(
            num_scalar_prefetch=1,                    # clamped local ids -> SMEM
            grid=grid,
            in_specs=[
                # Per-block validity mask as a small VMEM tile (TOK_BLOCK, 1).
                pl.BlockSpec((tok_block, 1), lambda b, ids: (b, 0)),
                # Embedding table stays in HBM; rows are gathered manually.
                pl.BlockSpec(memory_space=pl.ANY),
            ],
            out_specs=pl.BlockSpec((tok_block, D), lambda b, ids: (b, 0)),
            scratch_shapes=[
                pltpu.VMEM((tok_block, D), weight.dtype),   # gather landing buffer
                pltpu.SemaphoreType.DMA(()),                # shared row-copy sem
            ],
        ),
        compiler_params=pltpu.CompilerParams(
            dimension_semantics=("parallel",),   # token blocks independent (v7x megacore)
            vmem_limit_bytes=vmem_limit,
        ),
    )(local_ids, valid2d, w3)

    out = out[:T].reshape(B, S, D)
    # reduce_from_model_parallel_region: identity for world_size == 1.
    return out


if __name__ == "__main__":
    # Small deterministic setup consistent with the module's __init__
    # (single partition: world_size = 1, rank = 0).
    num_embeddings = 64       # vocab size
    embedding_dim = 128       # lane-dense output (multiple of 128)
    batch, seq = 2, 8

    vocab_start_index, vocab_end_index = 0, num_embeddings

    key = jax.random.PRNGKey(0)
    k_w, k_ids = jax.random.split(key)

    # xavier_normal_ init: std = sqrt(2 / (fan_in + fan_out))
    std = math.sqrt(2.0 / (num_embeddings + embedding_dim))
    weight = std * jax.random.normal(
        k_w, (num_embeddings, embedding_dim), dtype=jnp.float32)

    ids = jax.random.randint(
        k_ids, (batch, seq), minval=0, maxval=num_embeddings, dtype=jnp.int32)
    # Exercise the out-of-range mask path (clamped to row 0, then zeroed).
    ids = ids.at[0, 0].set(num_embeddings + 5)

    out = vocab_parallel_embedding(
        ids, weight,
        vocab_start_index=vocab_start_index,
        vocab_end_index=vocab_end_index,
    )
    out = jax.block_until_ready(out)

    # Reference: plain JAX gather with the same masking semantics.
    mask = (ids < vocab_start_index) | (ids >= vocab_end_index)
    midx = jnp.where(mask, 0, ids - vocab_start_index)
    ref = jnp.where(mask[..., None], 0.0, weight[midx])

    assert out.shape == (batch, seq, embedding_dim)
    assert jnp.allclose(out, ref, atol=1e-6), "mismatch vs reference"

    print("KERNEL_OK")
</pallas_src>

<mosaic_0001>
module attributes {stable_mosaic.version = 11 : i64} {
  func.func @_embed_gather_kernel(%arg0: i32, %arg1: memref<16xi32, #tpu.memory_space<smem>>, %arg2: memref<16x1xi32, #tpu.memory_space<vmem>>, %arg3: memref<64x1x128xf32, #tpu.memory_space<any>>, %arg4: memref<16x128xf32, #tpu.memory_space<vmem>>, %arg5: memref<16x128xf32, #tpu.memory_space<vmem>>, %arg6: memref<!tpu.dma_semaphore, #tpu.memory_space<semaphore_mem>>) attributes {dimension_semantics = [#tpu.dimension_semantics<parallel>], iteration_bounds = array<i64: 1>, scalar_prefetch = 1 : i64, scratch_operands = 2 : i64, tpu.core_type = #tpu.core_type<tc>, window_params = [{transform_indices = @transform_0, window_bounds = array<i64: 16, 1>}, {}, {transform_indices = @transform_2, window_bounds = array<i64: 16, 128>}]} {
    %c16_i32 = arith.constant 16 : i32
    %0 = arith.muli %arg0, %c16_i32 : i32
    %c0_i32 = arith.constant 0 : i32
    %1 = arith.addi %0, %c0_i32 : i32
    %2 = arith.index_cast %1 : i32 to index
    %3 = memref.load %arg1[%2] : memref<16xi32, #tpu.memory_space<smem>>
    %c0_i32_0 = arith.constant 0 : i32
    %c0_i32_1 = arith.constant 0 : i32
    %4 = tpu.memref_slice %arg3[%3, %c0_i32_0, %c0_i32_1] : memref<64x1x128xf32, #tpu.memory_space<any>> -> memref<1x1x128xf32, #tpu.memory_space<any>>
    %5 = tpu.memref_squeeze %4 : memref<1x1x128xf32, #tpu.memory_space<any>> -> memref<1x128xf32, #tpu.memory_space<any>>
    %c0_i32_2 = arith.constant 0 : i32
    %c0_i32_3 = arith.constant 0 : i32
    %6 = tpu.memref_slice %arg5[%c0_i32_2, %c0_i32_3] : memref<16x128xf32, #tpu.memory_space<vmem>> -> memref<1x128xf32, #tpu.memory_space<vmem>>
    tpu.enqueue_dma source(%5 : memref<1x128xf32, #tpu.memory_space<any>>) target(%6 : memref<1x128xf32, #tpu.memory_space<vmem>>) target_semaphore(%arg6 : memref<!tpu.dma_semaphore, #tpu.memory_space<semaphore_mem>>)
    %c1_i32 = arith.constant 1 : i32
    %7 = arith.addi %0, %c1_i32 : i32
    %8 = arith.index_cast %7 : i32 to index
    %9 = memref.load %arg1[%8] : memref<16xi32, #tpu.memory_space<smem>>
    %c0_i32_4 = arith.constant 0 : i32
    %c0_i32_5 = arith.constant 0 : i32
    %10 = tpu.memref_slice %arg3[%9, %c0_i32_4, %c0_i32_5] : memref<64x1x128xf32, #tpu.memory_space<any>> -> memref<1x1x128xf32, #tpu.memory_space<any>>
    %11 = tpu.memref_squeeze %10 : memref<1x1x128xf32, #tpu.memory_space<any>> -> memref<1x128xf32, #tpu.memory_space<any>>
    %c1_i32_6 = arith.constant 1 : i32
    %c0_i32_7 = arith.constant 0 : i32
    %12 = tpu.memref_slice %arg5[%c1_i32_6, %c0_i32_7] : memref<16x128xf32, #tpu.memory_space<vmem>> -> memref<1x128xf32, #tpu.memory_space<vmem>>
    tpu.enqueue_dma source(%11 : memref<1x128xf32, #tpu.memory_space<any>>) target(%12 : memref<1x128xf32, #tpu.memory_space<vmem>>) target_semaphore(%arg6 : memref<!tpu.dma_semaphore, #tpu.memory_space<semaphore_mem>>)
    %c2_i32 = arith.constant 2 : i32
    %13 = arith.addi %0, %c2_i32 : i32
    %14 = arith.index_cast %13 : i32 to index
    %15 = memref.load %arg1[%14] : memref<16xi32, #tpu.memory_space<smem>>
    %c0_i32_8 = arith.constant 0 : i32
    %c0_i32_9 = arith.constant 0 : i32
    %16 = tpu.memref_slice %arg3[%15, %c0_i32_8, %c0_i32_9] : memref<64x1x128xf32, #tpu.memory_space<any>> -> memref<1x1x128xf32, #tpu.memory_space<any>>
    %17 = tpu.memref_squeeze %16 : memref<1x1x128xf32, #tpu.memory_space<any>> -> memref<1x128xf32, #tpu.memory_space<any>>
    %c2_i32_10 = arith.constant 2 : i32
    %c0_i32_11 = arith.constant 0 : i32
    %18 = tpu.memref_slice %arg5[%c2_i32_10, %c0_i32_11] : memref<16x128xf32, #tpu.memory_space<vmem>> -> memref<1x128xf32, #tpu.memory_space<vmem>>
    tpu.enqueue_dma source(%17 : memref<1x128xf32, #tpu.memory_space<any>>) target(%18 : memref<1x128xf32, #tpu.memory_space<vmem>>) target_semaphore(%arg6 : memref<!tpu.dma_semaphore, #tpu.memory_space<semaphore_mem>>)
    %c3_i32 = arith.constant 3 : i32
    %19 = arith.addi %0, %c3_i32 : i32
    %20 = arith.index_cast %19 : i32 to index
    %21 = memref.load %arg1[%20] : memref<16xi32, #tpu.memory_space<smem>>
    %c0_i32_12 = arith.constant 0 : i32
    %c0_i32_13 = arith.constant 0 : i32
    %22 = tpu.memref_slice %arg3[%21, %c0_i32_12, %c0_i32_13] : memref<64x1x128xf32, #tpu.memory_space<any>> -> memref<1x1x128xf32, #tpu.memory_space<any>>
    %23 = tpu.memref_squeeze %22 : memref<1x1x128xf32, #tpu.memory_space<any>> -> memref<1x128xf32, #tpu.memory_space<any>>
    %c3_i32_14 = arith.constant 3 : i32
    %c0_i32_15 = arith.constant 0 : i32
    %24 = tpu.memref_slice %arg5[%c3_i32_14, %c0_i32_15] : memref<16x128xf32, #tpu.memory_space<vmem>> -> memref<1x128xf32, #tpu.memory_space<vmem>>
    tpu.enqueue_dma source(%23 : memref<1x128xf32, #tpu.memory_space<any>>) target(%24 : memref<1x128xf32, #tpu.memory_space<vmem>>) target_semaphore(%arg6 : memref<!tpu.dma_semaphore, #tpu.memory_space<semaphore_mem>>)
    %c4_i32 = arith.constant 4 : i32
    %25 = arith.addi %0, %c4_i32 : i32
    %26 = arith.index_cast %25 : i32 to index
    %27 = memref.load %arg1[%26] : memref<16xi32, #tpu.memory_space<smem>>
    %c0_i32_16 = arith.constant 0 : i32
    %c0_i32_17 = arith.constant 0 : i32
    %28 = tpu.memref_slice %arg3[%27, %c0_i32_16, %c0_i32_17] : memref<64x1x128xf32, #tpu.memory_space<any>> -> memref<1x1x128xf32, #tpu.memory_space<any>>
    %29 = tpu.memref_squeeze %28 : memref<1x1x128xf32, #tpu.memory_space<any>> -> memref<1x128xf32, #tpu.memory_space<any>>
    %c4_i32_18 = arith.constant 4 : i32
    %c0_i32_19 = arith.constant 0 : i32
    %30 = tpu.memref_slice %arg5[%c4_i32_18, %c0_i32_19] : memref<16x128xf32, #tpu.memory_space<vmem>> -> memref<1x128xf32, #tpu.memory_space<vmem>>
    tpu.enqueue_dma source(%29 : memref<1x128xf32, #tpu.memory_space<any>>) target(%30 : memref<1x128xf32, #tpu.memory_space<vmem>>) target_semaphore(%arg6 : memref<!tpu.dma_semaphore, #tpu.memory_space<semaphore_mem>>)
    %c5_i32 = arith.constant 5 : i32
    %31 = arith.addi %0, %c5_i32 : i32
    %32 = arith.index_cast %31 : i32 to index
    %33 = memref.load %arg1[%32] : memref<16xi32, #tpu.memory_space<smem>>
    %c0_i32_20 = arith.constant 0 : i32
    %c0_i32_21 = arith.constant 0 : i32
    %34 = tpu.memref_slice %arg3[%33, %c0_i32_20, %c0_i32_21] : memref<64x1x128xf32, #tpu.memory_space<any>> -> memref<1x1x128xf32, #tpu.memory_space<any>>
    %35 = tpu.memref_squeeze %34 : memref<1x1x128xf32, #tpu.memory_space<any>> -> memref<1x128xf32, #tpu.memory_space<any>>
    %c5_i32_22 = arith.constant 5 : i32
    %c0_i32_23 = arith.constant 0 : i32
    %36 = tpu.memref_slice %arg5[%c5_i32_22, %c0_i32_23] : memref<16x128xf32, #tpu.memory_space<vmem>> -> memref<1x128xf32, #tpu.memory_space<vmem>>
    tpu.enqueue_dma source(%35 : memref<1x128xf32, #tpu.memory_space<any>>) target(%36 : memref<1x128xf32, #tpu.memory_space<vmem>>) target_semaphore(%arg6 : memref<!tpu.dma_semaphore, #tpu.memory_space<semaphore_mem>>)
    %c6_i32 = arith.constant 6 : i32
    %37 = arith.addi %0, %c6_i32 : i32
    %38 = arith.index_cast %37 : i32 to index
    %39 = memref.load %arg1[%38] : memref<16xi32, #tpu.memory_space<smem>>
    %c0_i32_24 = arith.constant 0 : i32
    %c0_i32_25 = arith.constant 0 : i32
    %40 = tpu.memref_slice %arg3[%39, %c0_i32_24, %c0_i32_25] : memref<64x1x128xf32, #tpu.memory_space<any>> -> memref<1x1x128xf32, #tpu.memory_space<any>>
    %41 = tpu.memref_squeeze %40 : memref<1x1x128xf32, #tpu.memory_space<any>> -> memref<1x128xf32, #tpu.memory_space<any>>
    %c6_i32_26 = arith.constant 6 : i32
    %c0_i32_27 = arith.constant 0 : i32
    %42 = tpu.memref_slice %arg5[%c6_i32_26, %c0_i32_27] : memref<16x128xf32, #tpu.memory_space<vmem>> -> memref<1x128xf32, #tpu.memory_space<vmem>>
    tpu.enqueue_dma source(%41 : memref<1x128xf32, #tpu.memory_space<any>>) target(%42 : memref<1x128xf32, #tpu.memory_space<vmem>>) target_semaphore(%arg6 : memref<!tpu.dma_semaphore, #tpu.memory_space<semaphore_mem>>)
    %c7_i32 = arith.constant 7 : i32
    %43 = arith.addi %0, %c7_i32 : i32
    %44 = arith.index_cast %43 : i32 to index
    %45 = memref.load %arg1[%44] : memref<16xi32, #tpu.memory_space<smem>>
    %c0_i32_28 = arith.constant 0 : i32
    %c0_i32_29 = arith.constant 0 : i32
    %46 = tpu.memref_slice %arg3[%45, %c0_i32_28, %c0_i32_29] : memref<64x1x128xf32, #tpu.memory_space<any>> -> memref<1x1x128xf32, #tpu.memory_space<any>>
    %47 = tpu.memref_squeeze %46 : memref<1x1x128xf32, #tpu.memory_space<any>> -> memref<1x128xf32, #tpu.memory_space<any>>
    %c7_i32_30 = arith.constant 7 : i32
    %c0_i32_31 = arith.constant 0 : i32
    %48 = tpu.memref_slice %arg5[%c7_i32_30, %c0_i32_31] : memref<16x128xf32, #tpu.memory_space<vmem>> -> memref<1x128xf32, #tpu.memory_space<vmem>>
    tpu.enqueue_dma source(%47 : memref<1x128xf32, #tpu.memory_space<any>>) target(%48 : memref<1x128xf32, #tpu.memory_space<vmem>>) target_semaphore(%arg6 : memref<!tpu.dma_semaphore, #tpu.memory_space<semaphore_mem>>)
    %c8_i32 = arith.constant 8 : i32
    %49 = arith.addi %0, %c8_i32 : i32
    %50 = arith.index_cast %49 : i32 to index
    %51 = memref.load %arg1[%50] : memref<16xi32, #tpu.memory_space<smem>>
    %c0_i32_32 = arith.constant 0 : i32
    %c0_i32_33 = arith.constant 0 : i32
    %52 = tpu.memref_slice %arg3[%51, %c0_i32_32, %c0_i32_33] : memref<64x1x128xf32, #tpu.memory_space<any>> -> memref<1x1x128xf32, #tpu.memory_space<any>>
    %53 = tpu.memref_squeeze %52 : memref<1x1x128xf32, #tpu.memory_space<any>> -> memref<1x128xf32, #tpu.memory_space<any>>
    %c8_i32_34 = arith.constant 8 : i32
    %c0_i32_35 = arith.constant 0 : i32
    %54 = tpu.memref_slice %arg5[%c8_i32_34, %c0_i32_35] : memref<16x128xf32, #tpu.memory_space<vmem>> -> memref<1x128xf32, #tpu.memory_space<vmem>>
    tpu.enqueue_dma source(%53 : memref<1x128xf32, #tpu.memory_space<any>>) target(%54 : memref<1x128xf32, #tpu.memory_space<vmem>>) target_semaphore(%arg6 : memref<!tpu.dma_semaphore, #tpu.memory_space<semaphore_mem>>)
    %c9_i32 = arith.constant 9 : i32
    %55 = arith.addi %0, %c9_i32 : i32
    %56 = arith.index_cast %55 : i32 to index
    %57 = memref.load %arg1[%56] : memref<16xi32, #tpu.memory_space<smem>>
    %c0_i32_36 = arith.constant 0 : i32
    %c0_i32_37 = arith.constant 0 : i32
    %58 = tpu.memref_slice %arg3[%57, %c0_i32_36, %c0_i32_37] : memref<64x1x128xf32, #tpu.memory_space<any>> -> memref<1x1x128xf32, #tpu.memory_space<any>>
    %59 = tpu.memref_squeeze %58 : memref<1x1x128xf32, #tpu.memory_space<any>> -> memref<1x128xf32, #tpu.memory_space<any>>
    %c9_i32_38 = arith.constant 9 : i32
    %c0_i32_39 = arith.constant 0 : i32
    %60 = tpu.memref_slice %arg5[%c9_i32_38, %c0_i32_39] : memref<16x128xf32, #tpu.memory_space<vmem>> -> memref<1x128xf32, #tpu.memory_space<vmem>>
    tpu.enqueue_dma source(%59 : memref<1x128xf32, #tpu.memory_space<any>>) target(%60 : memref<1x128xf32, #tpu.memory_space<vmem>>) target_semaphore(%arg6 : memref<!tpu.dma_semaphore, #tpu.memory_space<semaphore_mem>>)
    %c10_i32 = arith.constant 10 : i32
    %61 = arith.addi %0, %c10_i32 : i32
    %62 = arith.index_cast %61 : i32 to index
    %63 = memref.load %arg1[%62] : memref<16xi32, #tpu.memory_space<smem>>
    %c0_i32_40 = arith.constant 0 : i32
    %c0_i32_41 = arith.constant 0 : i32
    %64 = tpu.memref_slice %arg3[%63, %c0_i32_40, %c0_i32_41] : memref<64x1x128xf32, #tpu.memory_space<any>> -> memref<1x1x128xf32, #tpu.memory_space<any>>
    %65 = tpu.memref_squeeze %64 : memref<1x1x128xf32, #tpu.memory_space<any>> -> memref<1x128xf32, #tpu.memory_space<any>>
    %c10_i32_42 = arith.constant 10 : i32
    %c0_i32_43 = arith.constant 0 : i32
    %66 = tpu.memref_slice %arg5[%c10_i32_42, %c0_i32_43] : memref<16x128xf32, #tpu.memory_space<vmem>> -> memref<1x128xf32, #tpu.memory_space<vmem>>
    tpu.enqueue_dma source(%65 : memref<1x128xf32, #tpu.memory_space<any>>) target(%66 : memref<1x128xf32, #tpu.memory_space<vmem>>) target_semaphore(%arg6 : memref<!tpu.dma_semaphore, #tpu.memory_space<semaphore_mem>>)
    %c11_i32 = arith.constant 11 : i32
    %67 = arith.addi %0, %c11_i32 : i32
    %68 = arith.index_cast %67 : i32 to index
    %69 = memref.load %arg1[%68] : memref<16xi32, #tpu.memory_space<smem>>
    %c0_i32_44 = arith.constant 0 : i32
    %c0_i32_45 = arith.constant 0 : i32
    %70 = tpu.memref_slice %arg3[%69, %c0_i32_44, %c0_i32_45] : memref<64x1x128xf32, #tpu.memory_space<any>> -> memref<1x1x128xf32, #tpu.memory_space<any>>
    %71 = tpu.memref_squeeze %70 : memref<1x1x128xf32, #tpu.memory_space<any>> -> memref<1x128xf32, #tpu.memory_space<any>>
    %c11_i32_46 = arith.constant 11 : i32
    %c0_i32_47 = arith.constant 0 : i32
    %72 = tpu.memref_slice %arg5[%c11_i32_46, %c0_i32_47] : memref<16x128xf32, #tpu.memory_space<vmem>> -> memref<1x128xf32, #tpu.memory_space<vmem>>
    tpu.enqueue_dma source(%71 : memref<1x128xf32, #tpu.memory_space<any>>) target(%72 : memref<1x128xf32, #tpu.memory_space<vmem>>) target_semaphore(%arg6 : memref<!tpu.dma_semaphore, #tpu.memory_space<semaphore_mem>>)
    %c12_i32 = arith.constant 12 : i32
    %73 = arith.addi %0, %c12_i32 : i32
    %74 = arith.index_cast %73 : i32 to index
    %75 = memref.load %arg1[%74] : memref<16xi32, #tpu.memory_space<smem>>
    %c0_i32_48 = arith.constant 0 : i32
    %c0_i32_49 = arith.constant 0 : i32
    %76 = tpu.memref_slice %arg3[%75, %c0_i32_48, %c0_i32_49] : memref<64x1x128xf32, #tpu.memory_space<any>> -> memref<1x1x128xf32, #tpu.memory_space<any>>
    %77 = tpu.memref_squeeze %76 : memref<1x1x128xf32, #tpu.memory_space<any>> -> memref<1x128xf32, #tpu.memory_space<any>>
    %c12_i32_50 = arith.constant 12 : i32
    %c0_i32_51 = arith.constant 0 : i32
    %78 = tpu.memref_slice %arg5[%c12_i32_50, %c0_i32_51] : memref<16x128xf32, #tpu.memory_space<vmem>> -> memref<1x128xf32, #tpu.memory_space<vmem>>
    tpu.enqueue_dma source(%77 : memref<1x128xf32, #tpu.memory_space<any>>) target(%78 : memref<1x128xf32, #tpu.memory_space<vmem>>) target_semaphore(%arg6 : memref<!tpu.dma_semaphore, #tpu.memory_space<semaphore_mem>>)
    %c13_i32 = arith.constant 13 : i32
    %79 = arith.addi %0, %c13_i32 : i32
    %80 = arith.index_cast %79 : i32 to index
    %81 = memref.load %arg1[%80] : memref<16xi32, #tpu.memory_space<smem>>
    %c0_i32_52 = arith.constant 0 : i32
    %c0_i32_53 = arith.constant 0 : i32
    %82 = tpu.memref_slice %arg3[%81, %c0_i32_52, %c0_i32_53] : memref<64x1x128xf32, #tpu.memory_space<any>> -> memref<1x1x128xf32, #tpu.memory_space<any>>
    %83 = tpu.memref_squeeze %82 : memref<1x1x128xf32, #tpu.memory_space<any>> -> memref<1x128xf32, #tpu.memory_space<any>>
    %c13_i32_54 = arith.constant 13 : i32
    %c0_i32_55 = arith.constant 0 : i32
    %84 = tpu.memref_slice %arg5[%c13_i32_54, %c0_i32_55] : memref<16x128xf32, #tpu.memory_space<vmem>> -> memref<1x128xf32, #tpu.memory_space<vmem>>
    tpu.enqueue_dma source(%83 : memref<1x128xf32, #tpu.memory_space<any>>) target(%84 : memref<1x128xf32, #tpu.memory_space<vmem>>) target_semaphore(%arg6 : memref<!tpu.dma_semaphore, #tpu.memory_space<semaphore_mem>>)
    %c14_i32 = arith.constant 14 : i32
    %85 = arith.addi %0, %c14_i32 : i32
    %86 = arith.index_cast %85 : i32 to index
    %87 = memref.load %arg1[%86] : memref<16xi32, #tpu.memory_space<smem>>
    %c0_i32_56 = arith.constant 0 : i32
    %c0_i32_57 = arith.constant 0 : i32
    %88 = tpu.memref_slice %arg3[%87, %c0_i32_56, %c0_i32_57] : memref<64x1x128xf32, #tpu.memory_space<any>> -> memref<1x1x128xf32, #tpu.memory_space<any>>
    %89 = tpu.memref_squeeze %88 : memref<1x1x128xf32, #tpu.memory_space<any>> -> memref<1x128xf32, #tpu.memory_space<any>>
    %c14_i32_58 = arith.constant 14 : i32
    %c0_i32_59 = arith.constant 0 : i32
    %90 = tpu.memref_slice %arg5[%c14_i32_58, %c0_i32_59] : memref<16x128xf32, #tpu.memory_space<vmem>> -> memref<1x128xf32, #tpu.memory_space<vmem>>
    tpu.enqueue_dma source(%89 : memref<1x128xf32, #tpu.memory_space<any>>) target(%90 : memref<1x128xf32, #tpu.memory_space<vmem>>) target_semaphore(%arg6 : memref<!tpu.dma_semaphore, #tpu.memory_space<semaphore_mem>>)
    %c15_i32 = arith.constant 15 : i32
    %91 = arith.addi %0, %c15_i32 : i32
    %92 = arith.index_cast %91 : i32 to index
    %93 = memref.load %arg1[%92] : memref<16xi32, #tpu.memory_space<smem>>
    %c0_i32_60 = arith.constant 0 : i32
    %c0_i32_61 = arith.constant 0 : i32
    %94 = tpu.memref_slice %arg3[%93, %c0_i32_60, %c0_i32_61] : memref<64x1x128xf32, #tpu.memory_space<any>> -> memref<1x1x128xf32, #tpu.memory_space<any>>
    %95 = tpu.memref_squeeze %94 : memref<1x1x128xf32, #tpu.memory_space<any>> -> memref<1x128xf32, #tpu.memory_space<any>>
    %c15_i32_62 = arith.constant 15 : i32
    %c0_i32_63 = arith.constant 0 : i32
    %96 = tpu.memref_slice %arg5[%c15_i32_62, %c0_i32_63] : memref<16x128xf32, #tpu.memory_space<vmem>> -> memref<1x128xf32, #tpu.memory_space<vmem>>
    tpu.enqueue_dma source(%95 : memref<1x128xf32, #tpu.memory_space<any>>) target(%96 : memref<1x128xf32, #tpu.memory_space<vmem>>) target_semaphore(%arg6 : memref<!tpu.dma_semaphore, #tpu.memory_space<semaphore_mem>>)
    %c0_i32_64 = arith.constant 0 : i32
    %c0_i32_65 = arith.constant 0 : i32
    %c0_i32_66 = arith.constant 0 : i32
    %97 = tpu.memref_slice %arg3[%c0_i32_64, %c0_i32_65, %c0_i32_66] : memref<64x1x128xf32, #tpu.memory_space<any>> -> memref<1x1x128xf32, #tpu.memory_space<any>>
    %98 = tpu.memref_squeeze %97 : memref<1x1x128xf32, #tpu.memory_space<any>> -> memref<1x128xf32, #tpu.memory_space<any>>
    %c0_i32_67 = arith.constant 0 : i32
    %c0_i32_68 = arith.constant 0 : i32
    %99 = tpu.memref_slice %arg5[%c0_i32_67, %c0_i32_68] : memref<16x128xf32, #tpu.memory_space<vmem>> -> memref<1x128xf32, #tpu.memory_space<vmem>>
    tpu.wait_dma2 semaphore(%arg6 : memref<!tpu.dma_semaphore, #tpu.memory_space<semaphore_mem>>) src(%98 : memref<1x128xf32, #tpu.memory_space<any>>) dst(%99 : memref<1x128xf32, #tpu.memory_space<vmem>>)
    %c0_i32_69 = arith.constant 0 : i32
    %c0_i32_70 = arith.constant 0 : i32
    %c0_i32_71 = arith.constant 0 : i32
    %100 = tpu.memref_slice %arg3[%c0_i32_69, %c0_i32_70, %c0_i32_71] : memref<64x1x128xf32, #tpu.memory_space<any>> -> memref<1x1x128xf32, #tpu.memory_space<any>>
    %101 = tpu.memref_squeeze %100 : memref<1x1x128xf32, #tpu.memory_space<any>> -> memref<1x128xf32, #tpu.memory_space<any>>
    %c1_i32_72 = arith.constant 1 : i32
    %c0_i32_73 = arith.constant 0 : i32
    %102 = tpu.memref_slice %arg5[%c1_i32_72, %c0_i32_73] : memref<16x128xf32, #tpu.memory_space<vmem>> -> memref<1x128xf32, #tpu.memory_space<vmem>>
    tpu.wait_dma2 semaphore(%arg6 : memref<!tpu.dma_semaphore, #tpu.memory_space<semaphore_mem>>) src(%101 : memref<1x128xf32, #tpu.memory_space<any>>) dst(%102 : memref<1x128xf32, #tpu.memory_space<vmem>>)
    %c0_i32_74 = arith.constant 0 : i32
    %c0_i32_75 = arith.constant 0 : i32
    %c0_i32_76 = arith.constant 0 : i32
    %103 = tpu.memref_slice %arg3[%c0_i32_74, %c0_i32_75, %c0_i32_76] : memref<64x1x128xf32, #tpu.memory_space<any>> -> memref<1x1x128xf32, #tpu.memory_space<any>>
    %104 = tpu.memref_squeeze %103 : memref<1x1x128xf32, #tpu.memory_space<any>> -> memref<1x128xf32, #tpu.memory_space<any>>
    %c2_i32_77 = arith.constant 2 : i32
    %c0_i32_78 = arith.constant 0 : i32
    %105 = tpu.memref_slice %arg5[%c2_i32_77, %c0_i32_78] : memref<16x128xf32, #tpu.memory_space<vmem>> -> memref<1x128xf32, #tpu.memory_space<vmem>>
    tpu.wait_dma2 semaphore(%arg6 : memref<!tpu.dma_semaphore, #tpu.memory_space<semaphore_mem>>) src(%104 : memref<1x128xf32, #tpu.memory_space<any>>) dst(%105 : memref<1x128xf32, #tpu.memory_space<vmem>>)
    %c0_i32_79 = arith.constant 0 : i32
    %c0_i32_80 = arith.constant 0 : i32
    %c0_i32_81 = arith.constant 0 : i32
    %106 = tpu.memref_slice %arg3[%c0_i32_79, %c0_i32_80, %c0_i32_81] : memref<64x1x128xf32, #tpu.memory_space<any>> -> memref<1x1x128xf32, #tpu.memory_space<any>>
    %107 = tpu.memref_squeeze %106 : memref<1x1x128xf32, #tpu.memory_space<any>> -> memref<1x128xf32, #tpu.memory_space<any>>
    %c3_i32_82 = arith.constant 3 : i32
    %c0_i32_83 = arith.constant 0 : i32
    %108 = tpu.memref_slice %arg5[%c3_i32_82, %c0_i32_83] : memref<16x128xf32, #tpu.memory_space<vmem>> -> memref<1x128xf32, #tpu.memory_space<vmem>>
    tpu.wait_dma2 semaphore(%arg6 : memref<!tpu.dma_semaphore, #tpu.memory_space<semaphore_mem>>) src(%107 : memref<1x128xf32, #tpu.memory_space<any>>) dst(%108 : memref<1x128xf32, #tpu.memory_space<vmem>>)
    %c0_i32_84 = arith.constant 0 : i32
    %c0_i32_85 = arith.constant 0 : i32
    %c0_i32_86 = arith.constant 0 : i32
    %109 = tpu.memref_slice %arg3[%c0_i32_84, %c0_i32_85, %c0_i32_86] : memref<64x1x128xf32, #tpu.memory_space<any>> -> memref<1x1x128xf32, #tpu.memory_space<any>>
    %110 = tpu.memref_squeeze %109 : memref<1x1x128xf32, #tpu.memory_space<any>> -> memref<1x128xf32, #tpu.memory_space<any>>
    %c4_i32_87 = arith.constant 4 : i32
    %c0_i32_88 = arith.constant 0 : i32
    %111 = tpu.memref_slice %arg5[%c4_i32_87, %c0_i32_88] : memref<16x128xf32, #tpu.memory_space<vmem>> -> memref<1x128xf32, #tpu.memory_space<vmem>>
    tpu.wait_dma2 semaphore(%arg6 : memref<!tpu.dma_semaphore, #tpu.memory_space<semaphore_mem>>) src(%110 : memref<1x128xf32, #tpu.memory_space<any>>) dst(%111 : memref<1x128xf32, #tpu.memory_space<vmem>>)
    %c0_i32_89 = arith.constant 0 : i32
    %c0_i32_90 = arith.constant 0 : i32
    %c0_i32_91 = arith.constant 0 : i32
    %112 = tpu.memref_slice %arg3[%c0_i32_89, %c0_i32_90, %c0_i32_91] : memref<64x1x128xf32, #tpu.memory_space<any>> -> memref<1x1x128xf32, #tpu.memory_space<any>>
    %113 = tpu.memref_squeeze %112 : memref<1x1x128xf32, #tpu.memory_space<any>> -> memref<1x128xf32, #tpu.memory_space<any>>
    %c5_i32_92 = arith.constant 5 : i32
    %c0_i32_93 = arith.constant 0 : i32
    %114 = tpu.memref_slice %arg5[%c5_i32_92, %c0_i32_93] : memref<16x128xf32, #tpu.memory_space<vmem>> -> memref<1x128xf32, #tpu.memory_space<vmem>>
    tpu.wait_dma2 semaphore(%arg6 : memref<!tpu.dma_semaphore, #tpu.memory_space<semaphore_mem>>) src(%113 : memref<1x128xf32, #tpu.memory_space<any>>) dst(%114 : memref<1x128xf32, #tpu.memory_space<vmem>>)
    %c0_i32_94 = arith.constant 0 : i32
    %c0_i32_95 = arith.constant 0 : i32
    %c0_i32_96 = arith.constant 0 : i32
    %115 = tpu.memref_slice %arg3[%c0_i32_94, %c0_i32_95, %c0_i32_96] : memref<64x1x128xf32, #tpu.memory_space<any>> -> memref<1x1x128xf32, #tpu.memory_space<any>>
    %116 = tpu.memref_squeeze %115 : memref<1x1x128xf32, #tpu.memory_space<any>> -> memref<1x128xf32, #tpu.memory_space<any>>
    %c6_i32_97 = arith.constant 6 : i32
    %c0_i32_98 = arith.constant 0 : i32
    %117 = tpu.memref_slice %arg5[%c6_i32_97, %c0_i32_98] : memref<16x128xf32, #tpu.memory_space<vmem>> -> memref<1x128xf32, #tpu.memory_space<vmem>>
    tpu.wait_dma2 semaphore(%arg6 : memref<!tpu.dma_semaphore, #tpu.memory_space<semaphore_mem>>) src(%116 : memref<1x128xf32, #tpu.memory_space<any>>) dst(%117 : memref<1x128xf32, #tpu.memory_space<vmem>>)
    %c0_i32_99 = arith.constant 0 : i32
    %c0_i32_100 = arith.constant 0 : i32
    %c0_i32_101 = arith.constant 0 : i32
    %118 = tpu.memref_slice %arg3[%c0_i32_99, %c0_i32_100, %c0_i32_101] : memref<64x1x128xf32, #tpu.memory_space<any>> -> memref<1x1x128xf32, #tpu.memory_space<any>>
    %119 = tpu.memref_squeeze %118 : memref<1x1x128xf32, #tpu.memory_space<any>> -> memref<1x128xf32, #tpu.memory_space<any>>
    %c7_i32_102 = arith.constant 7 : i32
    %c0_i32_103 = arith.constant 0 : i32
    %120 = tpu.memref_slice %arg5[%c7_i32_102, %c0_i32_103] : memref<16x128xf32, #tpu.memory_space<vmem>> -> memref<1x128xf32, #tpu.memory_space<vmem>>
    tpu.wait_dma2 semaphore(%arg6 : memref<!tpu.dma_semaphore, #tpu.memory_space<semaphore_mem>>) src(%119 : memref<1x128xf32, #tpu.memory_space<any>>) dst(%120 : memref<1x128xf32, #tpu.memory_space<vmem>>)
    %c0_i32_104 = arith.constant 0 : i32
    %c0_i32_105 = arith.constant 0 : i32
    %c0_i32_106 = arith.constant 0 : i32
    %121 = tpu.memref_slice %arg3[%c0_i32_104, %c0_i32_105, %c0_i32_106] : memref<64x1x128xf32, #tpu.memory_space<any>> -> memref<1x1x128xf32, #tpu.memory_space<any>>
    %122 = tpu.memref_squeeze %121 : memref<1x1x128xf32, #tpu.memory_space<any>> -> memref<1x128xf32, #tpu.memory_space<any>>
    %c8_i32_107 = arith.constant 8 : i32
    %c0_i32_108 = arith.constant 0 : i32
    %123 = tpu.memref_slice %arg5[%c8_i32_107, %c0_i32_108] : memref<16x128xf32, #tpu.memory_space<vmem>> -> memref<1x128xf32, #tpu.memory_space<vmem>>
    tpu.wait_dma2 semaphore(%arg6 : memref<!tpu.dma_semaphore, #tpu.memory_space<semaphore_mem>>) src(%122 : memref<1x128xf32, #tpu.memory_space<any>>) dst(%123 : memref<1x128xf32, #tpu.memory_space<vmem>>)
    %c0_i32_109 = arith.constant 0 : i32
    %c0_i32_110 = arith.constant 0 : i32
    %c0_i32_111 = arith.constant 0 : i32
    %124 = tpu.memref_slice %arg3[%c0_i32_109, %c0_i32_110, %c0_i32_111] : memref<64x1x128xf32, #tpu.memory_space<any>> -> memref<1x1x128xf32, #tpu.memory_space<any>>
    %125 = tpu.memref_squeeze %124 : memref<1x1x128xf32, #tpu.memory_space<any>> -> memref<1x128xf32, #tpu.memory_space<any>>
    %c9_i32_112 = arith.constant 9 : i32
    %c0_i32_113 = arith.constant 0 : i32
    %126 = tpu.memref_slice %arg5[%c9_i32_112, %c0_i32_113] : memref<16x128xf32, #tpu.memory_space<vmem>> -> memref<1x128xf32, #tpu.memory_space<vmem>>
    tpu.wait_dma2 semaphore(%arg6 : memref<!tpu.dma_semaphore, #tpu.memory_space<semaphore_mem>>) src(%125 : memref<1x128xf32, #tpu.memory_space<any>>) dst(%126 : memref<1x128xf32, #tpu.memory_space<vmem>>)
    %c0_i32_114 = arith.constant 0 : i32
    %c0_i32_115 = arith.constant 0 : i32
    %c0_i32_116 = arith.constant 0 : i32
    %127 = tpu.memref_slice %arg3[%c0_i32_114, %c0_i32_115, %c0_i32_116] : memref<64x1x128xf32, #tpu.memory_space<any>> -> memref<1x1x128xf32, #tpu.memory_space<any>>
    %128 = tpu.memref_squeeze %127 : memref<1x1x128xf32, #tpu.memory_space<any>> -> memref<1x128xf32, #tpu.memory_space<any>>
    %c10_i32_117 = arith.constant 10 : i32
    %c0_i32_118 = arith.constant 0 : i32
    %129 = tpu.memref_slice %arg5[%c10_i32_117, %c0_i32_118] : memref<16x128xf32, #tpu.memory_space<vmem>> -> memref<1x128xf32, #tpu.memory_space<vmem>>
    tpu.wait_dma2 semaphore(%arg6 : memref<!tpu.dma_semaphore, #tpu.memory_space<semaphore_mem>>) src(%128 : memref<1x128xf32, #tpu.memory_space<any>>) dst(%129 : memref<1x128xf32, #tpu.memory_space<vmem>>)
    %c0_i32_119 = arith.constant 0 : i32
    %c0_i32_120 = arith.constant 0 : i32
    %c0_i32_121 = arith.constant 0 : i32
    %130 = tpu.memref_slice %arg3[%c0_i32_119, %c0_i32_120, %c0_i32_121] : memref<64x1x128xf32, #tpu.memory_space<any>> -> memref<1x1x128xf32, #tpu.memory_space<any>>
    %131 = tpu.memref_squeeze %130 : memref<1x1x128xf32, #tpu.memory_space<any>> -> memref<1x128xf32, #tpu.memory_space<any>>
    %c11_i32_122 = arith.constant 11 : i32
    %c0_i32_123 = arith.constant 0 : i32
    %132 = tpu.memref_slice %arg5[%c11_i32_122, %c0_i32_123] : memref<16x128xf32, #tpu.memory_space<vmem>> -> memref<1x128xf32, #tpu.memory_space<vmem>>
    tpu.wait_dma2 semaphore(%arg6 : memref<!tpu.dma_semaphore, #tpu.memory_space<semaphore_mem>>) src(%131 : memref<1x128xf32, #tpu.memory_space<any>>) dst(%132 : memref<1x128xf32, #tpu.memory_space<vmem>>)
    %c0_i32_124 = arith.constant 0 : i32
    %c0_i32_125 = arith.constant 0 : i32
    %c0_i32_126 = arith.constant 0 : i32
    %133 = tpu.memref_slice %arg3[%c0_i32_124, %c0_i32_125, %c0_i32_126] : memref<64x1x128xf32, #tpu.memory_space<any>> -> memref<1x1x128xf32, #tpu.memory_space<any>>
    %134 = tpu.memref_squeeze %133 : memref<1x1x128xf32, #tpu.memory_space<any>> -> memref<1x128xf32, #tpu.memory_space<any>>
    %c12_i32_127 = arith.constant 12 : i32
    %c0_i32_128 = arith.constant 0 : i32
    %135 = tpu.memref_slice %arg5[%c12_i32_127, %c0_i32_128] : memref<16x128xf32, #tpu.memory_space<vmem>> -> memref<1x128xf32, #tpu.memory_space<vmem>>
    tpu.wait_dma2 semaphore(%arg6 : memref<!tpu.dma_semaphore, #tpu.memory_space<semaphore_mem>>) src(%134 : memref<1x128xf32, #tpu.memory_space<any>>) dst(%135 : memref<1x128xf32, #tpu.memory_space<vmem>>)
    %c0_i32_129 = arith.constant 0 : i32
    %c0_i32_130 = arith.constant 0 : i32
    %c0_i32_131 = arith.constant 0 : i32
    %136 = tpu.memref_slice %arg3[%c0_i32_129, %c0_i32_130, %c0_i32_131] : memref<64x1x128xf32, #tpu.memory_space<any>> -> memref<1x1x128xf32, #tpu.memory_space<any>>
    %137 = tpu.memref_squeeze %136 : memref<1x1x128xf32, #tpu.memory_space<any>> -> memref<1x128xf32, #tpu.memory_space<any>>
    %c13_i32_132 = arith.constant 13 : i32
    %c0_i32_133 = arith.constant 0 : i32
    %138 = tpu.memref_slice %arg5[%c13_i32_132, %c0_i32_133] : memref<16x128xf32, #tpu.memory_space<vmem>> -> memref<1x128xf32, #tpu.memory_space<vmem>>
    tpu.wait_dma2 semaphore(%arg6 : memref<!tpu.dma_semaphore, #tpu.memory_space<semaphore_mem>>) src(%137 : memref<1x128xf32, #tpu.memory_space<any>>) dst(%138 : memref<1x128xf32, #tpu.memory_space<vmem>>)
    %c0_i32_134 = arith.constant 0 : i32
    %c0_i32_135 = arith.constant 0 : i32
    %c0_i32_136 = arith.constant 0 : i32
    %139 = tpu.memref_slice %arg3[%c0_i32_134, %c0_i32_135, %c0_i32_136] : memref<64x1x128xf32, #tpu.memory_space<any>> -> memref<1x1x128xf32, #tpu.memory_space<any>>
    %140 = tpu.memref_squeeze %139 : memref<1x1x128xf32, #tpu.memory_space<any>> -> memref<1x128xf32, #tpu.memory_space<any>>
    %c14_i32_137 = arith.constant 14 : i32
    %c0_i32_138 = arith.constant 0 : i32
    %141 = tpu.memref_slice %arg5[%c14_i32_137, %c0_i32_138] : memref<16x128xf32, #tpu.memory_space<vmem>> -> memref<1x128xf32, #tpu.memory_space<vmem>>
    tpu.wait_dma2 semaphore(%arg6 : memref<!tpu.dma_semaphore, #tpu.memory_space<semaphore_mem>>) src(%140 : memref<1x128xf32, #tpu.memory_space<any>>) dst(%141 : memref<1x128xf32, #tpu.memory_space<vmem>>)
    %c0_i32_139 = arith.constant 0 : i32
    %c0_i32_140 = arith.constant 0 : i32
    %c0_i32_141 = arith.constant 0 : i32
    %142 = tpu.memref_slice %arg3[%c0_i32_139, %c0_i32_140, %c0_i32_141] : memref<64x1x128xf32, #tpu.memory_space<any>> -> memref<1x1x128xf32, #tpu.memory_space<any>>
    %143 = tpu.memref_squeeze %142 : memref<1x1x128xf32, #tpu.memory_space<any>> -> memref<1x128xf32, #tpu.memory_space<any>>
    %c15_i32_142 = arith.constant 15 : i32
    %c0_i32_143 = arith.constant 0 : i32
    %144 = tpu.memref_slice %arg5[%c15_i32_142, %c0_i32_143] : memref<16x128xf32, #tpu.memory_space<vmem>> -> memref<1x128xf32, #tpu.memory_space<vmem>>
    tpu.wait_dma2 semaphore(%arg6 : memref<!tpu.dma_semaphore, #tpu.memory_space<semaphore_mem>>) src(%143 : memref<1x128xf32, #tpu.memory_space<any>>) dst(%144 : memref<1x128xf32, #tpu.memory_space<vmem>>)
    %c0 = arith.constant 0 : index
    %c0_144 = arith.constant 0 : index
    %145 = vector.load %arg2[%c0, %c0_144] : memref<16x1xi32, #tpu.memory_space<vmem>>, vector<16x1xi32>
    %c0_i32_145 = arith.constant 0 : i32
    %146 = vector.broadcast %c0_i32_145 : i32 to vector<16x1xi32>
    %147 = arith.cmpi ne, %145, %146 : vector<16x1xi32>
    %c0_146 = arith.constant 0 : index
    %c0_147 = arith.constant 0 : index
    %148 = vector.load %arg5[%c0_146, %c0_147] : memref<16x128xf32, #tpu.memory_space<vmem>>, vector<16x128xf32>
    %c0_i32_148 = arith.constant 0 : i32
    %149 = arith.sitofp %c0_i32_148 : i32 to f32
    %150 = vector.shape_cast %147 : vector<16x1xi1> to vector<16x1xi1>
    %151 = vector.broadcast %150 : vector<16x1xi1> to vector<16x128xi1>
    %152 = vector.broadcast %149 : f32 to vector<16x128xf32>
    %153 = arith.select %151, %148, %152 : vector<16x128xi1>, vector<16x128xf32>
    %c0_149 = arith.constant 0 : index
    %c0_150 = arith.constant 0 : index
    %154 = vector.load %arg4[%c0_149, %c0_150] : memref<16x128xf32, #tpu.memory_space<vmem>>, vector<16x128xf32>
    tpu.vector_store %arg4[%c0_149, %c0_150], %153 {strides = array<i32>} : memref<16x128xf32, #tpu.memory_space<vmem>>, vector<16x128xf32>,
    return
  }
  func.func @transform_0(%arg0: i32, %arg1: memref<16xi32, #tpu.memory_space<smem>>) -> (i32, i32) {
    %c0_i32 = arith.constant 0 : i32
    %c0_i32_0 = arith.constant 0 : i32
    return %arg0, %c0_i32 : i32, i32
  }
  func.func @transform_2(%arg0: i32, %arg1: memref<16xi32, #tpu.memory_space<smem>>) -> (i32, i32) {
    %c0_i32 = arith.constant 0 : i32
    %c0_i32_0 = arith.constant 0 : i32
    return %arg0, %c0_i32 : i32, i32
  }
}

</mosaic_0001>

<llo_original>
// kernel: tpu_custom_call.1
$region0: #{tpu_custom_call.1}
  #allocation0 [shape = 'u32[]', space=smem, size = 0x4, offset = 0x4, fixed_abs, tag = 'smem constant byte address 0x4 - core index']
  #allocation1 [shape = 'u32[144,128]{1,0:T(1,128)}', space=vmem, size = 0x12000, scoped, tag = 'internal scratch']
  #allocation2 [shape = 'f32[16,128]{1,0:T(8,128)}', space=vmem, size = 0x2000, scoped, tag = 'scratch operand']
  #allocation3 [shape = 's32[1]{0}', space=sflag, size = 0x4, scoped, tag = 'scratch operand']
  #allocation4 [shape = 's32[1]{0}', space=sflag, size = 0x4, scoped, tag = 'scoped memory for tpu_custom_call.1']
  #allocation5 [shape = 'u8[512]{0}', space=smem, size = 0x200, scoped, tag = 'prefetched SMEM operand 0']
  #allocation8 [shape = 's32[]', space=sflag, size = 0x4, offset = 0, fixed_abs, tag = 'sflag constant byte address 0x0 - dummy sync flag']
  #allocation9 [shape = 's32[]', space=sflag, size = 0x4, offset = 0, fixed_abs, tag = 'sflag constant byte address 0x0 - dummy sync flag']
  #allocation10 [shape = 'u32[]', space=smem, size = 0x4, offset = 0x44, fixed_abs, tag = 'smem constant byte address 0x44 - assertion arg 0']
  #allocation11 [shape = 'u32[]', space=smem, size = 0x4, offset = 0x48, fixed_abs, tag = 'smem constant byte address 0x48 - assertion arg 1']
  #allocation12 [shape = 's32[]', space=sflag, size = 0x4, offset = 0, fixed_abs, tag = 'sflag constant byte address 0x0 - dummy sync flag']
  #allocation13 [shape = 's32[]', space=sflag, size = 0x4, offset = 0, fixed_abs, tag = 'sflag constant byte address 0x0 - dummy sync flag']
  #allocation14 [shape = 's32[]', space=sflag, size = 0x4, offset = 0, fixed_abs, tag = 'sflag constant byte address 0x0 - dummy sync flag']
  #allocation15 [shape = 's32[]', space=sflag, size = 0x4, offset = 0, fixed_abs, tag = 'sflag constant byte address 0x0 - dummy sync flag']
  #allocation16 [shape = 's32[]', space=sflag, size = 0x4, offset = 0, fixed_abs, tag = 'sflag constant byte address 0x0 - dummy sync flag']
  #allocation17 [shape = 's32[]', space=sflag, size = 0x4, offset = 0, fixed_abs, tag = 'sflag constant byte address 0x0 - dummy sync flag']
  #allocation18 [shape = 's32[]', space=sflag, size = 0x4, offset = 0, fixed_abs, tag = 'sflag constant byte address 0x0 - dummy sync flag']
  #allocation19 [shape = 's32[]', space=sflag, size = 0x4, offset = 0, fixed_abs, tag = 'sflag constant byte address 0x0 - dummy sync flag']
  #allocation20 [shape = 's32[]', space=sflag, size = 0x4, offset = 0, fixed_abs, tag = 'sflag constant byte address 0x0 - dummy sync flag']
  #allocation21 [shape = 's32[]', space=sflag, size = 0x4, offset = 0, fixed_abs, tag = 'sflag constant byte address 0x0 - dummy sync flag']
  #allocation22 [shape = 's32[]', space=sflag, size = 0x4, offset = 0, fixed_abs, tag = 'sflag constant byte address 0x0 - dummy sync flag']
  #allocation23 [shape = 's32[]', space=sflag, size = 0x4, offset = 0, fixed_abs, tag = 'sflag constant byte address 0x0 - dummy sync flag']
  #allocation24 [shape = 's32[]', space=sflag, size = 0x4, offset = 0, fixed_abs, tag = 'sflag constant byte address 0x0 - dummy sync flag']
  #allocation25 [shape = 's32[]', space=sflag, size = 0x4, offset = 0, fixed_abs, tag = 'sflag constant byte address 0x0 - dummy sync flag']
  #allocation26 [shape = 's32[]', space=sflag, size = 0x4, offset = 0, fixed_abs, tag = 'sflag constant byte address 0x0 - dummy sync flag']
  #allocation27 [shape = 's32[]', space=sflag, size = 0x4, offset = 0, fixed_abs, tag = 'sflag constant byte address 0x0 - dummy sync flag']
  #allocation28 [shape = 's32[]', space=sflag, size = 0x4, offset = 0, fixed_abs, tag = 'sflag constant byte address 0x0 - dummy sync flag']
  #allocation29 [shape = 's32[]', space=sflag, size = 0x4, offset = 0, fixed_abs, tag = 'sflag constant byte address 0x0 - dummy sync flag']
  #allocation30 [shape = 's32[]', space=sflag, size = 0x4, offset = 0, fixed_abs, tag = 'sflag constant byte address 0x0 - dummy sync flag']
  #allocation31 [shape = 's32[]', space=sflag, size = 0x4, offset = 0, fixed_abs, tag = 'sflag constant byte address 0x0 - dummy sync flag']
  #allocation32 [shape = 's32[]', space=sflag, size = 0x4, offset = 0, fixed_abs, tag = 'sflag constant byte address 0x0 - dummy sync flag']
  #allocation33 [shape = 's32[]', space=sflag, size = 0x4, offset = 0, fixed_abs, tag = 'sflag constant byte address 0x0 - dummy sync flag']
  #allocation34 [shape = 's32[]', space=sflag, size = 0x4, offset = 0, fixed_abs, tag = 'sflag constant byte address 0x0 - dummy sync flag']
  #allocation35 [shape = 's32[]', space=sflag, size = 0x4, offset = 0, fixed_abs, tag = 'sflag constant byte address 0x0 - dummy sync flag']
  #allocation36 [shape = 's32[]', space=sflag, size = 0x4, offset = 0, fixed_abs, tag = 'sflag constant byte address 0x0 - dummy sync flag']
  #allocation37 [shape = 's32[]', space=sflag, size = 0x4, offset = 0, fixed_abs, tag = 'sflag constant byte address 0x0 - dummy sync flag']
  #allocation38 [shape = 's32[]', space=sflag, size = 0x4, offset = 0, fixed_abs, tag = 'sflag constant byte address 0x0 - dummy sync flag']
  #allocation39 [shape = 's32[]', space=sflag, size = 0x4, offset = 0, fixed_abs, tag = 'sflag constant byte address 0x0 - dummy sync flag']
  #allocation40 [shape = 's32[]', space=sflag, size = 0x4, offset = 0, fixed_abs, tag = 'sflag constant byte address 0x0 - dummy sync flag']
  #allocation41 [shape = 's32[]', space=sflag, size = 0x4, offset = 0, fixed_abs, tag = 'sflag constant byte address 0x0 - dummy sync flag']
  %s0 = inlined_call_operand.vmem [shape: s32[16], index: 0, kind: input, shape index: {}]
  %s1 = inlined_call_operand.vmem [shape: s32[16,1], index: 1, kind: input, shape index: {}]
  %s2 = inlined_call_operand.hbm [shape: f32[64,1,128], index: 2, kind: input, shape index: {}]
  %s3 = inlined_call_operand.hbm [shape: f32[16,128], index: 3, kind: output, shape index: {}]
  %s4 = sld [smem:[#allocation0]]
  $region78: #{tpu_custom_call.1} parent=0
    _
  %s6 = ssub.s32 1, %s4
  %s7 = scalar_select 0, %s6, %s4
  %s8 = sshll.u32 %s0, 4
  %s9 = int_to_ptr.vmem [resolvable:$true] %s8
  %11 = dma.vmem_to_smem %s9, 16, [#allocation5], [#allocation4]
  %12 = dma.done [#allocation4], 16
  %13 = sfence
  $region1: #{tpu_custom_call.1} parent=0
    #allocation6 [shape = 'u8[8192]{0}', space=vmem, size = 0x2000, scoped, tag = 'output window, operand 0, single buffered']
    #allocation7 [shape = 's32[1]{0}', space=sflag, size = 0x4, scoped, tag = 'scoped memory for tpu_custom_call.1']
    %14 = vsyncpa [#allocation7], 0
    // Predicated region
    $region2: #{tpu_custom_call.1} parent=1 // pred_check
      _
    $region3: #{tpu_custom_call.1} parent=1 // pred_check_branch
      %16 = sbr.rel (0) target = $region5
    $region4: #{tpu_custom_call.1} parent=1 // pred_region
      _
    $region5: #{tpu_custom_call.1} parent=1 // pred_fallthru
      _
    %s17 = smul.u32 0, 16
    %s18 = sld [smem:[#allocation5 + %s17]]
    %s19 = smul.addr %s18, 16
    %s20 = scalar_lea.hbm %s2, %s19
    // Predicated region
    $region6: #{tpu_custom_call.1} parent=1 // pred_check
      _
    $region7: #{tpu_custom_call.1} parent=1 // pred_check_branch
      %22 = sbr.rel target = $region9
    $region8: #{tpu_custom_call.1} parent=1 // pred_region
      %23 = sst [smem:[#allocation10]] [#allocation9]
      %24 = sst [smem:[#allocation11]] [#allocation8]
    $region9: #{tpu_custom_call.1} parent=1 // pred_fallthru
      _
    %26 = shalt.err (0)
    %s28 = sshll.u32 [#allocation2], 4
    %s29 = int_to_ptr.vmem [resolvable:$true] %s28
    %31 = dma.hbm_to_vmem [thread:$0]  %s20, 16, %s29, [#allocation3]
    %s32 = sadd.s32 %s17, 1
    %s33 = sld [smem:[#allocation5 + %s32]]
    %s34 = smul.addr %s33, 16
    %s35 = scalar_lea.hbm %s2, %s34
    %s36 = scalar_lea.vmem [#allocation2], 1
    // Predicated region
    $region10: #{tpu_custom_call.1} parent=1 // pred_check
      _
    $region11: #{tpu_custom_call.1} parent=1 // pred_check_branch
      %38 = sbr.rel target = $region13
    $region12: #{tpu_custom_call.1} parent=1 // pred_region
      %39 = sst [smem:[#allocation10]] [#allocation13]
      %40 = sst [smem:[#allocation11]] [#allocation12]
    $region13: #{tpu_custom_call.1} parent=1 // pred_fallthru
      _
    %42 = shalt.err (0)
    %s44 = sshll.u32 %s36, 4
    %s45 = int_to_ptr.vmem [resolvable:$true] %s44
    %47 = dma.hbm_to_vmem [thread:$0]  %s35, 16, %s45, [#allocation3]
    %s48 = sadd.s32 %s17, 2
    %s49 = sld [smem:[#allocation5 + %s48]]
    %s50 = smul.addr %s49, 16
    %s51 = scalar_lea.hbm %s2, %s50
    %s52 = scalar_lea.vmem [#allocation2], 2
    // Predicated region
    $region14: #{tpu_custom_call.1} parent=1 // pred_check
      _
    $region15: #{tpu_custom_call.1} parent=1 // pred_check_branch
      %54 = sbr.rel target = $region17
    $region16: #{tpu_custom_call.1} parent=1 // pred_region
      %55 = sst [smem:[#allocation10]] [#allocation15]
      %56 = sst [smem:[#allocation11]] [#allocation14]
    $region17: #{tpu_custom_call.1} parent=1 // pred_fallthru
      _
    %58 = shalt.err (0)
    %s60 = sshll.u32 %s52, 4
    %s61 = int_to_ptr.vmem [resolvable:$true] %s60
    %63 = dma.hbm_to_vmem [thread:$0]  %s51, 16, %s61, [#allocation3]
    %s64 = sadd.s32 %s17, 3
    %s65 = sld [smem:[#allocation5 + %s64]]
    %s66 = smul.addr %s65, 16
    %s67 = scalar_lea.hbm %s2, %s66
    %s68 = scalar_lea.vmem [#allocation2], 3
    // Predicated region
    $region18: #{tpu_custom_call.1} parent=1 // pred_check
      _
    $region19: #{tpu_custom_call.1} parent=1 // pred_check_branch
      %70 = sbr.rel target = $region21
    $region20: #{tpu_custom_call.1} parent=1 // pred_region
      %71 = sst [smem:[#allocation10]] [#allocation17]
      %72 = sst [smem:[#allocation11]] [#allocation16]
    $region21: #{tpu_custom_call.1} parent=1 // pred_fallthru
      _
    %74 = shalt.err (0)
    %s76 = sshll.u32 %s68, 4
    %s77 = int_to_ptr.vmem [resolvable:$true] %s76
    %79 = dma.hbm_to_vmem [thread:$0]  %s67, 16, %s77, [#allocation3]
    %s80 = sadd.s32 %s17, 4
    %s81 = sld [smem:[#allocation5 + %s80]]
    %s82 = smul.addr %s81, 16
    %s83 = scalar_lea.hbm %s2, %s82
    %s84 = scalar_lea.vmem [#allocation2], 4
    // Predicated region
    $region22: #{tpu_custom_call.1} parent=1 // pred_check
      _
    $region23: #{tpu_custom_call.1} parent=1 // pred_check_branch
      %86 = sbr.rel target = $region25
    $region24: #{tpu_custom_call.1} parent=1 // pred_region
      %87 = sst [smem:[#allocation10]] [#allocation19]
      %88 = sst [smem:[#allocation11]] [#allocation18]
    $region25: #{tpu_custom_call.1} parent=1 // pred_fallthru
      _
    %90 = shalt.err (0)
    %s92 = sshll.u32 %s84, 4
    %s93 = int_to_ptr.vmem [resolvable:$true] %s92
    %95 = dma.hbm_to_vmem [thread:$0]  %s83, 16, %s93, [#allocation3]
    %s96 = sadd.s32 %s17, 5
    %s97 = sld [smem:[#allocation5 + %s96]]
    %s98 = smul.addr %s97, 16
    %s99 = scalar_lea.hbm %s2, %s98
    %s100 = scalar_lea.vmem [#allocation2], 5
    // Predicated region
    $region26: #{tpu_custom_call.1} parent=1 // pred_check
      _
    $region27: #{tpu_custom_call.1} parent=1 // pred_check_branch
      %102 = sbr.rel target = $region29
    $region28: #{tpu_custom_call.1} parent=1 // pred_region
      %103 = sst [smem:[#allocation10]] [#allocation21]
      %104 = sst [smem:[#allocation11]] [#allocation20]
    $region29: #{tpu_custom_call.1} parent=1 // pred_fallthru
      _
    %106 = shalt.err (0)
    %s108 = sshll.u32 %s100, 4
    %s109 = int_to_ptr.vmem [resolvable:$true] %s108
    %111 = dma.hbm_to_vmem [thread:$0]  %s99, 16, %s109, [#allocation3]
    %s112 = sadd.s32 %s17, 6
    %s113 = sld [smem:[#allocation5 + %s112]]
    %s114 = smul.addr %s113, 16
    %s115 = scalar_lea.hbm %s2, %s114
    %s116 = scalar_lea.vmem [#allocation2], 6
    // Predicated region
    $region30: #{tpu_custom_call.1} parent=1 // pred_check
      _
    $region31: #{tpu_custom_call.1} parent=1 // pred_check_branch
      %118 = sbr.rel target = $region33
    $region32: #{tpu_custom_call.1} parent=1 // pred_region
      %119 = sst [smem:[#allocation10]] [#allocation23]
      %120 = sst [smem:[#allocation11]] [#allocation22]
    $region33: #{tpu_custom_call.1} parent=1 // pred_fallthru
      _
    %122 = shalt.err (0)
    %s124 = sshll.u32 %s116, 4
    %s125 = int_to_ptr.vmem [resolvable:$true] %s124
    %127 = dma.hbm_to_vmem [thread:$0]  %s115, 16, %s125, [#allocation3]
    %s128 = sadd.s32 %s17, 7
    %s129 = sld [smem:[#allocation5 + %s128]]
    %s130 = smul.addr %s129, 16
    %s131 = scalar_lea.hbm %s2, %s130
    %s132 = scalar_lea.vmem [#allocation2], 7
    // Predicated region
    $region34: #{tpu_custom_call.1} parent=1 // pred_check
      _
    $region35: #{tpu_custom_call.1} parent=1 // pred_check_branch
      %134 = sbr.rel target = $region37
    $region36: #{tpu_custom_call.1} parent=1 // pred_region
      %135 = sst [smem:[#allocation10]] [#allocation25]
      %136 = sst [smem:[#allocation11]] [#allocation24]
    $region37: #{tpu_custom_call.1} parent=1 // pred_fallthru
      _
    %138 = shalt.err (0)
    %s140 = sshll.u32 %s132, 4
    %s141 = int_to_ptr.vmem [resolvable:$true] %s140
    %143 = dma.hbm_to_vmem [thread:$0]  %s131, 16, %s141, [#allocation3]
    %s144 = sadd.s32 %s17, 8
    %s145 = sld [smem:[#allocation5 + %s144]]
    %s146 = smul.addr %s145, 16
    %s147 = scalar_lea.hbm %s2, %s146
    %s148 = scalar_lea.vmem [#allocation2], 8
    // Predicated region
    $region38: #{tpu_custom_call.1} parent=1 // pred_check
      _
    $region39: #{tpu_custom_call.1} parent=1 // pred_check_branch
      %150 = sbr.rel target = $region41
    $region40: #{tpu_custom_call.1} parent=1 // pred_region
      %151 = sst [smem:[#allocation10]] [#allocation27]
      %152 = sst [smem:[#allocation11]] [#allocation26]
    $region41: #{tpu_custom_call.1} parent=1 // pred_fallthru
      _
    %154 = shalt.err (0)
    %s156 = sshll.u32 %s148, 4
    %s157 = int_to_ptr.vmem [resolvable:$true] %s156
    %159 = dma.hbm_to_vmem [thread:$0]  %s147, 16, %s157, [#allocation3]
    %s160 = sadd.s32 %s17, 9
    %s161 = sld [smem:[#allocation5 + %s160]]
    %s162 = smul.addr %s161, 16
    %s163 = scalar_lea.hbm %s2, %s162
    %s164 = scalar_lea.vmem [#allocation2], 9
    // Predicated region
    $region42: #{tpu_custom_call.1} parent=1 // pred_check
      _
    $region43: #{tpu_custom_call.1} parent=1 // pred_check_branch
      %166 = sbr.rel target = $region45
    $region44: #{tpu_custom_call.1} parent=1 // pred_region
      %167 = sst [smem:[#allocation10]] [#allocation29]
      %168 = sst [smem:[#allocation11]] [#allocation28]
    $region45: #{tpu_custom_call.1} parent=1 // pred_fallthru
      _
    %170 = shalt.err (0)
    %s172 = sshll.u32 %s164, 4
    %s173 = int_to_ptr.vmem [resolvable:$true] %s172
    %175 = dma.hbm_to_vmem [thread:$0]  %s163, 16, %s173, [#allocation3]
    %s176 = sadd.s32 %s17, 10
    %s177 = sld [smem:[#allocation5 + %s176]]
    %s178 = smul.addr %s177, 16
    %s179 = scalar_lea.hbm %s2, %s178
    %s180 = scalar_lea.vmem [#allocation2], 10
    // Predicated region
    $region46: #{tpu_custom_call.1} parent=1 // pred_check
      _
    $region47: #{tpu_custom_call.1} parent=1 // pred_check_branch
      %182 = sbr.rel target = $region49
    $region48: #{tpu_custom_call.1} parent=1 // pred_region
      %183 = sst [smem:[#allocation10]] [#allocation31]
      %184 = sst [smem:[#allocation11]] [#allocation30]
    $region49: #{tpu_custom_call.1} parent=1 // pred_fallthru
      _
    %186 = shalt.err (0)
    %s188 = sshll.u32 %s180, 4
    %s189 = int_to_ptr.vmem [resolvable:$true] %s188
    %191 = dma.hbm_to_vmem [thread:$0]  %s179, 16, %s189, [#allocation3]
    %s192 = sadd.s32 %s17, 11
    %s193 = sld [smem:[#allocation5 + %s192]]
    %s194 = smul.addr %s193, 16
    %s195 = scalar_lea.hbm %s2, %s194
    %s196 = scalar_lea.vmem [#allocation2], 11
    // Predicated region
    $region50: #{tpu_custom_call.1} parent=1 // pred_check
      _
    $region51: #{tpu_custom_call.1} parent=1 // pred_check_branch
      %198 = sbr.rel target = $region53
    $region52: #{tpu_custom_call.1} parent=1 // pred_region
      %199 = sst [smem:[#allocation10]] [#allocation33]
      %200 = sst [smem:[#allocation11]] [#allocation32]
    $region53: #{tpu_custom_call.1} parent=1 // pred_fallthru
      _
    %202 = shalt.err (0)
    %s204 = sshll.u32 %s196, 4
    %s205 = int_to_ptr.vmem [resolvable:$true] %s204
    %207 = dma.hbm_to_vmem [thread:$0]  %s195, 16, %s205, [#allocation3]
    %s208 = sadd.s32 %s17, 12
    %s209 = sld [smem:[#allocation5 + %s208]]
    %s210 = smul.addr %s209, 16
    %s211 = scalar_lea.hbm %s2, %s210
    %s212 = scalar_lea.vmem [#allocation2], 12
    // Predicated region
    $region54: #{tpu_custom_call.1} parent=1 // pred_check
      _
    $region55: #{tpu_custom_call.1} parent=1 // pred_check_branch
      %214 = sbr.rel target = $region57
    $region56: #{tpu_custom_call.1} parent=1 // pred_region
      %215 = sst [smem:[#allocation10]] [#allocation35]
      %216 = sst [smem:[#allocation11]] [#allocation34]
    $region57: #{tpu_custom_call.1} parent=1 // pred_fallthru
      _
    %218 = shalt.err (0)
    %s220 = sshll.u32 %s212, 4
    %s221 = int_to_ptr.vmem [resolvable:$true] %s220
    %223 = dma.hbm_to_vmem [thread:$0]  %s211, 16, %s221, [#allocation3]
    %s224 = sadd.s32 %s17, 13
    %s225 = sld [smem:[#allocation5 + %s224]]
    %s226 = smul.addr %s225, 16
    %s227 = scalar_lea.hbm %s2, %s226
    %s228 = scalar_lea.vmem [#allocation2], 13
    // Predicated region
    $region58: #{tpu_custom_call.1} parent=1 // pred_check
      _
    $region59: #{tpu_custom_call.1} parent=1 // pred_check_branch
      %230 = sbr.rel target = $region61
    $region60: #{tpu_custom_call.1} parent=1 // pred_region
      %231 = sst [smem:[#allocation10]] [#allocation37]
      %232 = sst [smem:[#allocation11]] [#allocation36]
    $region61: #{tpu_custom_call.1} parent=1 // pred_fallthru
      _
    %234 = shalt.err (0)
    %s236 = sshll.u32 %s228, 4
    %s237 = int_to_ptr.vmem [resolvable:$true] %s236
    %239 = dma.hbm_to_vmem [thread:$0]  %s227, 16, %s237, [#allocation3]
    %s240 = sadd.s32 %s17, 14
    %s241 = sld [smem:[#allocation5 + %s240]]
    %s242 = smul.addr %s241, 16
    %s243 = scalar_lea.hbm %s2, %s242
    %s244 = scalar_lea.vmem [#allocation2], 14
    // Predicated region
    $region62: #{tpu_custom_call.1} parent=1 // pred_check
      _
    $region63: #{tpu_custom_call.1} parent=1 // pred_check_branch
      %246 = sbr.rel target = $region65
    $region64: #{tpu_custom_call.1} parent=1 // pred_region
      %247 = sst [smem:[#allocation10]] [#allocation39]
      %248 = sst [smem:[#allocation11]] [#allocation38]
    $region65: #{tpu_custom_call.1} parent=1 // pred_fallthru
      _
    %250 = shalt.err (0)
    %s252 = sshll.u32 %s244, 4
    %s253 = int_to_ptr.vmem [resolvable:$true] %s252
    %255 = dma.hbm_to_vmem [thread:$0]  %s243, 16, %s253, [#allocation3]
    %s256 = sadd.s32 %s17, 15
    %s257 = sld [smem:[#allocation5 + %s256]]
    %s258 = smul.addr %s257, 16
    %s259 = scalar_lea.hbm %s2, %s258
    %s260 = scalar_lea.vmem [#allocation2], 15
    // Predicated region
    $region66: #{tpu_custom_call.1} parent=1 // pred_check
      _
    $region67: #{tpu_custom_call.1} parent=1 // pred_check_branch
      %262 = sbr.rel target = $region69
    $region68: #{tpu_custom_call.1} parent=1 // pred_region
      %263 = sst [smem:[#allocation10]] [#allocation41]
      %264 = sst [smem:[#allocation11]] [#allocation40]
    $region69: #{tpu_custom_call.1} parent=1 // pred_fallthru
      _
    %266 = shalt.err (0)
    %s268 = sshll.u32 %s260, 4
    %s269 = int_to_ptr.vmem [resolvable:$true] %s268
    %271 = dma.hbm_to_vmem [thread:$0]  %s259, 16, %s269, [#allocation3]
    %s272 = smul.u32 1, 1
    %s273 = sshll.u32 %s272, 4
    %274 = dma.done [#allocation3], %s273
    %s275 = sshll.u32 %s272, 4
    %276 = dma.done [#allocation3], %s275
    %s277 = sshll.u32 %s272, 4
    %278 = dma.done [#allocation3], %s277
    %s279 = sshll.u32 %s272, 4
    %280 = dma.done [#allocation3], %s279
    %s281 = sshll.u32 %s272, 4
    %282 = dma.done [#allocation3], %s281
    %s283 = sshll.u32 %s272, 4
    %284 = dma.done [#allocation3], %s283
    %s285 = sshll.u32 %s272, 4
    %286 = dma.done [#allocation3], %s285
    %s287 = sshll.u32 %s272, 4
    %288 = dma.done [#allocation3], %s287
    %s289 = sshll.u32 %s272, 4
    %290 = dma.done [#allocation3], %s289
    %s291 = sshll.u32 %s272, 4
    %292 = dma.done [#allocation3], %s291
    %s293 = sshll.u32 %s272, 4
    %294 = dma.done [#allocation3], %s293
    %s295 = sshll.u32 %s272, 4
    %296 = dma.done [#allocation3], %s295
    %s297 = sshll.u32 %s272, 4
    %298 = dma.done [#allocation3], %s297
    %s299 = sshll.u32 %s272, 4
    %300 = dma.done [#allocation3], %s299
    %s301 = sshll.u32 %s272, 4
    %302 = dma.done [#allocation3], %s301
    %s303 = sshll.u32 %s272, 4
    %304 = dma.done [#allocation3], %s303
    %v305 = vld [vmem:[%s1] sm:$0xff]
    %v306 = vld [vmem:[%s1 + $0x8] sm:$0xff]
    %vm307 = vcmp.ne.s32.totalorder %v305, 0
    %vm308 = vcmp.ne.s32.totalorder %v306, 0
    %v309 = vld [vmem:[#allocation2] sm:$0xff]
    %v310 = vld [vmem:[#allocation2 + $0x8] sm:$0xff]
    %v311 = vsel %vm307, 1, 0
    %v312 = vsel %vm308, 1, 0
    %313 = vset.pattern.permute.xlu0 0
    %314 = vperm.xlu0 %313, %v311
    %v315 = vpop.permute.xlu0 %314
    %316 = vset.pattern.permute.xlu0 0
    %317 = vperm.xlu0 %316, %v312
    %v318 = vpop.permute.xlu0 %317
    %vm319 = vcmp.eq.s32.totalorder %v315, 1
    %vm320 = vcmp.eq.s32.totalorder %v318, 1
    %v321 = vsel %vm319, %v309, 0.0
    %v322 = vsel %vm320, %v310, 0.0
    %323 = vst [vmem:[#allocation6] sm:$0xff] %v321
    %324 = vst [vmem:[#allocation6 + $0x8] sm:$0xff] %v322
    // Predicated region
    $region70: #{tpu_custom_call.1} parent=1 // pred_check
      _
    $region71: #{tpu_custom_call.1} parent=1 // pred_check_branch
      %326 = sbr.rel (0) target = $region73
    $region72: #{tpu_custom_call.1} parent=1 // pred_region
      %s328 = ssub.s32 256, 256
      %329 = vsyncadd [#allocation7], %s328
      %s330 = sshll.u32 [#allocation6], 4
      %s331 = int_to_ptr.vmem [resolvable:$true] %s330
      %336 = dma.vmem_to_hbm [thread:$0]  %s331, 256, %s3, [#allocation7], 128, 128, 8
    $region73: #{tpu_custom_call.1} parent=1 // pred_fallthru
      _
    // Predicated region
    $region74: #{tpu_custom_call.1} parent=1 // pred_check
      _
    $region75: #{tpu_custom_call.1} parent=1 // pred_check_branch
      %338 = sbr.rel (0) target = $region77
    $region76: #{tpu_custom_call.1} parent=1 // pred_region
      %339 = dma.done [#allocation7], 256
    $region77: #{tpu_custom_call.1} parent=1 // pred_fallthru
      _
    %340 = vsyncpa [#allocation7], 1
  %341 = vsyncmov [#allocation3]
  %s342 = vpop.sfrf %341
  %p343 = scmp.eq.s32.totalorder %s342, 0
  %p344 = pneg %p343
  %346 = shalt.err (%p344)

</llo_original>
